<compile_context>
chip_gen: v6e
topology: v6e:2x2x1
jax: 0.10.0
libtpu: 0.0.40
codegen_flags: <defaults>
</compile_context>

<pallas_src>
import functools
import math

import jax
import jax.numpy as jnp
from jax.experimental import pallas as pl
from jax.experimental.pallas import tpu as pltpu


def _default_vmem_limit():
    """48 MiB on v7x (64 MiB physical), 64 MiB on v5e/v6e (128 MiB physical)."""
    try:
        cap = pltpu.get_tpu_info().vmem_capacity_bytes
        return min(64 * 1024 * 1024, int(cap) * 3 // 4)
    except Exception:
        return 48 * 1024 * 1024


_VMEM_LIMIT = _default_vmem_limit()
_K_FULL_MAX = 4096          # up to this K the whole reduction fits one block


def _round_up(x, m):
    return (x + m - 1) // m * m


def _pad2d(a, rows, cols):
    r, c = a.shape
    if r == rows and c == cols:
        return a
    return jnp.pad(a, ((0, rows - r), (0, cols - c)))


def _pick_block(dim, max_block, unit):
    """Largest block <= max_block that is a multiple of `unit` and divides dim;
    if none exists, return the capped multiple (caller pads)."""
    if dim <= max_block:
        return dim
    cap = (max_block // unit) * unit
    for b in range(cap, unit - 1, -unit):
        if dim % b == 0:
            return b
    return cap


# ----------------------------- Pallas kernels ------------------------------

def _apply_epilogue(y, activation):
    if activation == "gelu":
        # tanh-approx GELU (goes to the EUP slot; erf is a long VALU polynomial)
        return 0.5 * y * (1.0 + jnp.tanh(
            0.7978845608028654 * (y + 0.044715 * (y * y * y))))
    if activation == "tanh":
        return jnp.tanh(y)
    if activation == "log_softmax":          # requires full N in the block
        y = y - jnp.max(y, axis=-1, keepdims=True)
        return y - jnp.log(jnp.sum(jnp.exp(y), axis=-1, keepdims=True))
    return y


def _linear_kernel(x_ref, w_ref, b_ref, o_ref, *, activation):
    """y = x @ w + b (+ epilogue); full K per block, grid = (gm, gn)."""
    y = jnp.dot(x_ref[...], w_ref[...],
                preferred_element_type=jnp.float32) + b_ref[...]
    o_ref[...] = _apply_epilogue(y, activation).astype(o_ref.dtype)


def _linear_ktiled_kernel(x_ref, w_ref, b_ref, o_ref, acc_ref, *, activation):
    """Fallback for very large K: grid = (gm, gn, gk) with f32 accumulator."""
    @pl.when(pl.program_id(2) == 0)
    def _():
        acc_ref[...] = jnp.zeros_like(acc_ref)

    acc_ref[...] += jnp.dot(x_ref[...], w_ref[...],
                            preferred_element_type=jnp.float32)

    @pl.when(pl.program_id(2) == pl.num_programs(2) - 1)
    def _():
        y = acc_ref[...] + b_ref[...]
        o_ref[...] = _apply_epilogue(y, activation).astype(o_ref.dtype)


def linear(x2d, w, b, activation=None, *, tm=512, tn=1536, tk=768,
           out_dtype=jnp.bfloat16):
    """y = x2d @ w + b (+ fused epilogue).  x2d: [M,K] bf16, w: [K,N] bf16,
    b: [1,N] f32."""
    M, K = x2d.shape
    N = w.shape[1]
    bm = _pick_block(M, tm, 8)
    bn = N if activation == "log_softmax" else _pick_block(N, tn, 128)
    Mp, Np = _round_up(M, bm), _round_up(N, bn)
    xp = _pad2d(x2d, Mp, K)
    wp = w if Np == N else _pad2d(w, K, Np)
    bp = b if Np == N else _pad2d(b, 1, Np)

    if K <= _K_FULL_MAX:
        out = pl.pallas_call(
            functools.partial(_linear_kernel, activation=activation),
            out_shape=jax.ShapeDtypeStruct((Mp, Np), out_dtype),
            grid=(Mp // bm, Np // bn),
            in_specs=[
                pl.BlockSpec((bm, K), lambda i, j: (i, 0)),
                pl.BlockSpec((K, bn), lambda i, j: (0, j)),
                pl.BlockSpec((1, bn), lambda i, j: (0, j)),
            ],
            out_specs=pl.BlockSpec((bm, bn), lambda i, j: (i, j)),
            compiler_params=pltpu.CompilerParams(
                dimension_semantics=("parallel", "parallel"),
                vmem_limit_bytes=_VMEM_LIMIT),
        )(xp, wp, bp)
    else:
        bk = _pick_block(K, tk, 128)
        Kp = _round_up(K, bk)
        xp = _pad2d(xp, Mp, Kp)
        wp = _pad2d(wp, Kp, Np)
        out = pl.pallas_call(
            functools.partial(_linear_ktiled_kernel, activation=activation),
            out_shape=jax.ShapeDtypeStruct((Mp, Np), out_dtype),
            grid=(Mp // bm, Np // bn, Kp // bk),
            in_specs=[
                pl.BlockSpec((bm, bk), lambda i, j, k: (i, k)),
                pl.BlockSpec((bk, bn), lambda i, j, k: (k, j)),
                pl.BlockSpec((1, bn), lambda i, j, k: (0, j)),
            ],
            out_specs=pl.BlockSpec((bm, bn), lambda i, j, k: (i, j)),
            scratch_shapes=[pltpu.VMEM((bm, bn), jnp.float32)],
            compiler_params=pltpu.CompilerParams(
                dimension_semantics=("parallel", "parallel", "arbitrary"),
                vmem_limit_bytes=_VMEM_LIMIT),
        )(xp, wp, bp)

    if Mp != M or Np != N:
        out = out[:M, :N]
    return out


def _linear_residual_ln_kernel(x_ref, w_ref, b_ref, r_ref, g_ref, bt_ref,
                               o_ref, *, eps):
    """LayerNorm((x @ w + b) + residual).  Full K and full N per block."""
    y = jnp.dot(x_ref[...], w_ref[...], preferred_element_type=jnp.float32)
    y = y + b_ref[...] + r_ref[...].astype(jnp.float32)
    mean = jnp.mean(y, axis=-1, keepdims=True)
    var = jnp.mean(jnp.square(y - mean), axis=-1, keepdims=True)
    o_ref[...] = ((y - mean) * jax.lax.rsqrt(var + eps) * g_ref[...]
                  + bt_ref[...]).astype(o_ref.dtype)


def linear_residual_layernorm(x2d, w, b, res2d, gamma, beta, eps, *, tm=512):
    """x2d:[M,K] bf16, w:[K,N] bf16, b/gamma/beta:[1,N] f32, res2d:[M,N] bf16."""
    M, K = x2d.shape
    N = w.shape[1]
    bm = _pick_block(M, tm, 8)
    Mp = _round_up(M, bm)
    xp = _pad2d(x2d, Mp, K)
    rp = _pad2d(res2d, Mp, N)
    out = pl.pallas_call(
        functools.partial(_linear_residual_ln_kernel, eps=float(eps)),
        out_shape=jax.ShapeDtypeStruct((Mp, N), jnp.bfloat16),
        grid=(Mp // bm,),
        in_specs=[
            pl.BlockSpec((bm, K), lambda i: (i, 0)),
            pl.BlockSpec((K, N), lambda i: (0, 0)),
            pl.BlockSpec((1, N), lambda i: (0, 0)),
            pl.BlockSpec((bm, N), lambda i: (i, 0)),
            pl.BlockSpec((1, N), lambda i: (0, 0)),
            pl.BlockSpec((1, N), lambda i: (0, 0)),
        ],
        out_specs=pl.BlockSpec((bm, N), lambda i: (i, 0)),
        compiler_params=pltpu.CompilerParams(
            dimension_semantics=("parallel",),
            vmem_limit_bytes=_VMEM_LIMIT),
    )(xp, w, b, rp, gamma, beta)
    return out[:M] if Mp != M else out


def _layernorm_kernel(x_ref, g_ref, b_ref, o_ref, *, eps):
    x = x_ref[...].astype(jnp.float32)
    mean = jnp.mean(x, axis=-1, keepdims=True)
    var = jnp.mean(jnp.square(x - mean), axis=-1, keepdims=True)
    o_ref[...] = ((x - mean) * jax.lax.rsqrt(var + eps) * g_ref[...]
                  + b_ref[...]).astype(o_ref.dtype)


def layer_norm(x2d, gamma, beta, eps=1e-12, *, tm=1024):
    """Row-tiled LayerNorm over the last dim of a [M, H] slab (bf16 out)."""
    M, H = x2d.shape
    bm = _pick_block(M, tm, 8)
    Mp = _round_up(M, bm)
    xp = _pad2d(x2d, Mp, H)
    out = pl.pallas_call(
        functools.partial(_layernorm_kernel, eps=float(eps)),
        out_shape=jax.ShapeDtypeStruct((Mp, H), jnp.bfloat16),
        grid=(Mp // bm,),
        in_specs=[
            pl.BlockSpec((bm, H), lambda i: (i, 0)),
            pl.BlockSpec((1, H), lambda i: (0, 0)),
            pl.BlockSpec((1, H), lambda i: (0, 0)),
        ],
        out_specs=pl.BlockSpec((bm, H), lambda i: (i, 0)),
        compiler_params=pltpu.CompilerParams(
            dimension_semantics=("parallel",),
            vmem_limit_bytes=_VMEM_LIMIT),
    )(xp, gamma, beta)
    return out[:M] if Mp != M else out


def _mha_block(q, k, v, mask, heads, d_head, scale, out_dtype):
    """Multi-head attention on already-loaded [S, heads*d_head] q/k/v values.
    mask: [1, S] additive (f32). Returns [S, heads*d_head]."""
    outs = []
    for h in range(heads):                       # static unroll (small `heads`)
        sl = slice(h * d_head, (h + 1) * d_head)
        qs = q[:, sl] * scale                    # fold 1/sqrt(dh) into q
        s = jax.lax.dot_general(qs, k[:, sl], (((1,), (1,)), ((), ())),
                                preferred_element_type=jnp.float32) + mask
        s = s - jnp.max(s, axis=-1, keepdims=True)
        p = jnp.exp(s)
        l = jnp.sum(p, axis=-1, keepdims=True)
        ctx = jnp.dot(p.astype(v.dtype), v[:, sl],
                      preferred_element_type=jnp.float32)
        outs.append((ctx * pl.reciprocal(l, approx=True)).astype(out_dtype))
    return outs[0] if heads == 1 else jnp.concatenate(outs, axis=-1)


def _attention_grouped_kernel(q_ref, k_ref, v_ref, m_ref, o_ref, *,
                              heads, d_head, scale):
    """One (batch, head-group) per grid step; group is a 128-lane multiple."""
    o_ref[0] = _mha_block(q_ref[0], k_ref[0], v_ref[0], m_ref[0],
                          heads, d_head, scale, o_ref.dtype)


def _attention_fused_kernel(qkv_ref, m_ref, o_ref, *, n_heads, d_head, scale):
    """Fallback: all heads of one batch element per grid step."""
    H = n_heads * d_head
    x = qkv_ref[0]                               # [S, 3H]
    o_ref[0] = _mha_block(x[:, :H], x[:, H:2 * H], x[:, 2 * H:],
                          m_ref[0], n_heads, d_head, scale, o_ref.dtype)


def fused_attention(qkv3d, add_mask, n_heads):
    """qkv3d: [B, S, 3H] bf16 (layout q|k|v); add_mask: [B,1,S] f32 additive.
    Returns [B, S, H] bf16 with heads concatenated lane-dense."""
    B, S, threeH = qkv3d.shape
    H = threeH // 3
    d_head = H // n_heads
    scale = 1.0 / math.sqrt(d_head)
    out_shape = jax.ShapeDtypeStruct((B, S, H), jnp.bfloat16)

    # Head grouping: smallest group whose lane width is a 128 multiple.
    gh = None
    for cand in range(1, n_heads + 1):
        if n_heads % cand == 0 and (cand * d_head) % 128 == 0:
            gh = cand
            break

    if gh is not None and gh < n_heads:
        G = n_heads // gh
        gw = gh * d_head
        return pl.pallas_call(
            functools.partial(_attention_grouped_kernel, heads=gh,
                              d_head=d_head, scale=scale),
            out_shape=out_shape,
            grid=(B, G),
            in_specs=[
                pl.BlockSpec((1, S, gw), lambda b, g: (b, 0, g)),
                pl.BlockSpec((1, S, gw), lambda b, g: (b, 0, G + g)),
                pl.BlockSpec((1, S, gw), lambda b, g: (b, 0, 2 * G + g)),
                pl.BlockSpec((1, 1, S), lambda b, g: (b, 0, 0)),
            ],
            out_specs=pl.BlockSpec((1, S, gw), lambda b, g: (b, 0, g)),
            compiler_params=pltpu.CompilerParams(
                dimension_semantics=("parallel", "parallel"),
                vmem_limit_bytes=_VMEM_LIMIT),
        )(qkv3d, qkv3d, qkv3d, add_mask)

    # Fallback for tiny head dims (e.g. the small test config).
    return pl.pallas_call(
        functools.partial(_attention_fused_kernel, n_heads=n_heads,
                          d_head=d_head, scale=scale),
        out_shape=out_shape,
        grid=(B,),
        in_specs=[
            pl.BlockSpec((1, S, threeH), lambda b: (b, 0, 0)),
            pl.BlockSpec((1, 1, S), lambda b: (b, 0, 0)),
        ],
        out_specs=pl.BlockSpec((1, S, H), lambda b: (b, 0, 0)),
        compiler_params=pltpu.CompilerParams(
            dimension_semantics=("parallel",),
            vmem_limit_bytes=_VMEM_LIMIT),
    )(qkv3d, add_mask)


def _pooled_head_kernel(x_ref, wp_ref, bp_ref, wc_ref, bc_ref, o_ref):
    """log_softmax((tanh(cls @ Wp + bp)) @ Wc + bc) fused in one kernel."""
    pooled = jnp.tanh(jnp.dot(x_ref[...], wp_ref[...],
                              preferred_element_type=jnp.float32) + bp_ref[...])
    logits = jnp.dot(pooled.astype(wc_ref.dtype), wc_ref[...],
                     preferred_element_type=jnp.float32) + bc_ref[...]
    logits = logits - jnp.max(logits, axis=-1, keepdims=True)
    o_ref[...] = logits - jnp.log(jnp.sum(jnp.exp(logits), axis=-1,
                                          keepdims=True))


def pooled_classifier_head(cls_tok, wp, bp, wc, bc):
    """cls_tok: [B, H] bf16.  Returns log-softmax logits [B, L] f32."""
    B, H = cls_tok.shape
    L = wc.shape[1]
    return pl.pallas_call(
        _pooled_head_kernel,
        out_shape=jax.ShapeDtypeStruct((B, L), jnp.float32),
        grid=(1,),
        in_specs=[
            pl.BlockSpec((B, H), lambda i: (0, 0)),
            pl.BlockSpec((H, H), lambda i: (0, 0)),
            pl.BlockSpec((1, H), lambda i: (0, 0)),
            pl.BlockSpec((H, L), lambda i: (0, 0)),
            pl.BlockSpec((1, L), lambda i: (0, 0)),
        ],
        out_specs=pl.BlockSpec((B, L), lambda i: (0, 0)),
        compiler_params=pltpu.CompilerParams(vmem_limit_bytes=_VMEM_LIMIT),
    )(cls_tok, wp, bp, wc, bc)


def _log_softmax_ax0_kernel(x_ref, o_ref):
    x = x_ref[...].astype(jnp.float32)
    s = x - jnp.max(x, axis=0, keepdims=True)
    o_ref[...] = s - jnp.log(jnp.sum(jnp.exp(s), axis=0, keepdims=True))


def log_softmax_axis0(x2d, *, tn=16384):
    """log_softmax over the leading axis of [B, N]; columns stay lane-dense."""
    B, N = x2d.shape
    bn = _pick_block(N, tn, 128)
    Np = _round_up(N, bn)
    xp = _pad2d(x2d, B, Np)
    out = pl.pallas_call(
        _log_softmax_ax0_kernel,
        out_shape=jax.ShapeDtypeStruct((B, Np), jnp.float32),
        grid=(Np // bn,),
        in_specs=[pl.BlockSpec((B, bn), lambda j: (0, j))],
        out_specs=pl.BlockSpec((B, bn), lambda j: (0, j)),
        compiler_params=pltpu.CompilerParams(
            dimension_semantics=("parallel",),
            vmem_limit_bytes=_VMEM_LIMIT),
    )(xp)
    return out[:, :N] if Np != N else out


# ------------------------------ model (glue) -------------------------------

CONFIG = dict(
    vocab_size=64,
    hidden_size=32,
    num_hidden_layers=2,
    num_attention_heads=2,
    intermediate_size=64,
    max_position_embeddings=32,
    type_vocab_size=2,
    layer_norm_eps=1e-12,
)
NUM_LABELS = 4

_WDT = jnp.bfloat16   # weight / activation dtype (f32 MXU accumulation)


def init_params(key, cfg, num_labels):
    H = cfg["hidden_size"]
    V = cfg["vocab_size"]
    I = cfg["intermediate_size"]

    def nrm(k, shape):
        return (0.02 * jax.random.normal(k, shape, jnp.float32)).astype(_WDT)

    def zeros_row(n):           # biases / LN params pre-shaped (1, n), f32
        return jnp.zeros((1, n), jnp.float32)

    def ones_row(n):
        return jnp.ones((1, n), jnp.float32)

    keys = iter(jax.random.split(key, 256))
    p = {}
    p["word_emb"] = nrm(next(keys), (V, H))
    p["pos_emb"] = nrm(next(keys), (cfg["max_position_embeddings"], H))
    p["type_emb"] = nrm(next(keys), (cfg["type_vocab_size"], H))
    p["emb_ln_g"], p["emb_ln_b"] = ones_row(H), zeros_row(H)
    layers = []
    for _ in range(cfg["num_hidden_layers"]):
        layers.append(dict(
            # fused QKV projection: [H, 3H] = [wq | wk | wv]
            wqkv=jnp.concatenate(
                [nrm(next(keys), (H, H)) for _ in range(3)], axis=1),
            bqkv=zeros_row(3 * H),
            wo=nrm(next(keys), (H, H)), bo=zeros_row(H),
            attn_ln_g=ones_row(H), attn_ln_b=zeros_row(H),
            wi=nrm(next(keys), (H, I)), bi=zeros_row(I),
            wo2=nrm(next(keys), (I, H)), bo2=zeros_row(H),
            ffn_ln_g=ones_row(H), ffn_ln_b=zeros_row(H),
        ))
    p["layers"] = layers
    p["pooler_w"] = nrm(next(keys), (H, H))
    p["pooler_b"] = zeros_row(H)
    p["nsp_w"] = nrm(next(keys), (H, 2))
    p["nsp_b"] = zeros_row(2)
    p["mlm_w"] = nrm(next(keys), (H, V))
    p["mlm_b"] = zeros_row(V)
    p["cls_w"] = nrm(next(keys), (H, num_labels))
    p["cls_b"] = zeros_row(num_labels)
    return p


def bert_model(params, input_ids, attention_mask, token_type_ids, cfg):
    B, S = input_ids.shape
    H = cfg["hidden_size"]
    nH = cfg["num_attention_heads"]
    eps = cfg["layer_norm_eps"]

    # Embeddings (gathers stay in plain JAX; normalization in Pallas).
    x = (jnp.take(params["word_emb"], input_ids, axis=0)
         + params["pos_emb"][None, :S, :]
         + jnp.take(params["type_emb"], token_type_ids, axis=0))
    hidden2 = layer_norm(x.reshape(B * S, H), params["emb_ln_g"],
                         params["emb_ln_b"], eps)                 # [B*S,H] bf16

    add_mask = (1.0 - attention_mask.astype(jnp.float32))[:, None, :] * -10000.0

    for lp in params["layers"]:
        h2 = hidden2                                              # residual in
        qkv = linear(h2, lp["wqkv"], lp["bqkv"])                  # [B*S, 3H]
        ctx = fused_attention(qkv.reshape(B, S, 3 * H), add_mask, nH)  # [B,S,H]
        attn_ln = linear_residual_layernorm(
            ctx.reshape(B * S, H), lp["wo"], lp["bo"], h2,
            lp["attn_ln_g"], lp["attn_ln_b"], eps)                # [B*S, H]
        inter = linear(attn_ln, lp["wi"], lp["bi"], activation="gelu")
        hidden2 = linear_residual_layernorm(
            inter, lp["wo2"], lp["bo2"], attn_ln,
            lp["ffn_ln_g"], lp["ffn_ln_b"], eps)                  # [B*S, H]

    return hidden2                                                # [B*S, H]


def transformer_forward(params, kwargs, cfg, task="downstream"):
    input_ids = kwargs["input_ids"]
    B, S = input_ids.shape
    hidden2 = bert_model(params, input_ids, kwargs["attention_mask"],
                         kwargs["token_type_ids"], cfg)
    H = hidden2.shape[-1]
    last_hidden_state = hidden2.reshape(B, S, H)

    if task == "nsp":
        logits = pooled_classifier_head(
            last_hidden_state[:, 0, :], params["pooler_w"], params["pooler_b"],
            params["nsp_w"], params["nsp_b"])
    elif task == "mlm":
        # weight-streaming matmul: larger M tile for more weight reuse
        logits2d = linear(hidden2, params["mlm_w"], params["mlm_b"], tm=1024)
        V = logits2d.shape[-1]
        # F.log_softmax(logits) with no dim on a 3-D tensor follows PyTorch's
        # implicit-dim rule -> dim=0 (batch). Reduce over B with no transpose:
        # view [B*S, V] as [B, S*V] (lane-dense) and log-softmax over axis 0.
        logits = log_softmax_axis0(logits2d.reshape(B, S * V)).reshape(B, S, V)
    else:  # 'downstream'
        logits = pooled_classifier_head(
            last_hidden_state[:, 0, :], params["pooler_w"], params["pooler_b"],
            params["cls_w"], params["cls_b"])
    return last_hidden_state, logits


if __name__ == "__main__":
    key = jax.random.PRNGKey(0)
    pkey, dkey = jax.random.split(key)
    params = init_params(pkey, CONFIG, NUM_LABELS)

    B, S = 2, 8
    input_ids = jax.random.randint(dkey, (B, S), 0, CONFIG["vocab_size"],
                                   dtype=jnp.int32)
    attention_mask = jnp.ones((B, S), jnp.int32)
    token_type_ids = jnp.zeros((B, S), jnp.int32)
    kwargs = dict(input_ids=input_ids, attention_mask=attention_mask,
                  token_type_ids=token_type_ids)

    for task in ("downstream", "nsp", "mlm"):
        lhs, logits = transformer_forward(params, kwargs, CONFIG, task=task)
        jax.block_until_ready((lhs, logits))

    print("KERNEL_OK")
</pallas_src>

<mosaic_0001>
module attributes {stable_mosaic.version = 11 : i64} {
  func.func @_layernorm_kernel(%arg0: i32, %arg1: memref<16x32xbf16, #tpu.memory_space<vmem>>, %arg2: memref<1x32xf32, #tpu.memory_space<vmem>>, %arg3: memref<1x32xf32, #tpu.memory_space<vmem>>, %arg4: memref<16x32xbf16, #tpu.memory_space<vmem>>) attributes {dimension_semantics = [#tpu.dimension_semantics<parallel>], iteration_bounds = array<i64: 1>, scalar_prefetch = 0 : i64, scratch_operands = 0 : i64, tpu.core_type = #tpu.core_type<tc>, window_params = [{transform_indices = @transform_0, window_bounds = array<i64: 16, 32>}, {pipeline_mode = #tpu.pipeline_mode<synchronous>, transform_indices = @transform_1, window_bounds = array<i64: 1, 32>}, {pipeline_mode = #tpu.pipeline_mode<synchronous>, transform_indices = @transform_2, window_bounds = array<i64: 1, 32>}, {transform_indices = @transform_3, window_bounds = array<i64: 16, 32>}]} {
    %c0 = arith.constant 0 : index
    %c0_0 = arith.constant 0 : index
    %0 = vector.load %arg1[%c0, %c0_0] : memref<16x32xbf16, #tpu.memory_space<vmem>>, vector<16x32xbf16>
    %1 = arith.extf %0 : vector<16x32xbf16> to vector<16x32xf32>
    %cst = arith.constant dense<0.000000e+00> : vector<16xf32>
    %2 = vector.multi_reduction <add>, %1, %cst [1] : vector<16x32xf32> to vector<16xf32>
    %3 = vector.shape_cast %2 : vector<16xf32> to vector<16x1xf32>
    %cst_1 = arith.constant 3.200000e+01 : f32
    %4 = vector.broadcast %cst_1 : f32 to vector<16x1xf32>
    %5 = arith.divf %3, %4 : vector<16x1xf32>
    %6 = vector.broadcast %5 : vector<16x1xf32> to vector<16x32xf32>
    %7 = arith.subf %1, %6 : vector<16x32xf32>
    %8 = arith.mulf %7, %7 : vector<16x32xf32>
    %cst_2 = arith.constant dense<0.000000e+00> : vector<16xf32>
    %9 = vector.multi_reduction <add>, %8, %cst_2 [1] : vector<16x32xf32> to vector<16xf32>
    %10 = vector.shape_cast %9 : vector<16xf32> to vector<16x1xf32>
    %cst_3 = arith.constant 3.200000e+01 : f32
    %11 = vector.broadcast %cst_3 : f32 to vector<16x1xf32>
    %12 = arith.divf %10, %11 : vector<16x1xf32>
    %13 = vector.broadcast %5 : vector<16x1xf32> to vector<16x32xf32>
    %14 = arith.subf %1, %13 : vector<16x32xf32>
    %cst_4 = arith.constant 9.99999996E-13 : f32
    %15 = vector.broadcast %cst_4 : f32 to vector<16x1xf32>
    %16 = arith.addf %12, %15 : vector<16x1xf32>
    %17 = math.rsqrt %16 : vector<16x1xf32>
    %18 = vector.broadcast %17 : vector<16x1xf32> to vector<16x32xf32>
    %19 = arith.mulf %14, %18 : vector<16x32xf32>
    %c0_5 = arith.constant 0 : index
    %c0_6 = arith.constant 0 : index
    %20 = vector.load %arg2[%c0_5, %c0_6] : memref<1x32xf32, #tpu.memory_space<vmem>>, vector<1x32xf32>
    %21 = vector.broadcast %20 : vector<1x32xf32> to vector<16x32xf32>
    %22 = arith.mulf %19, %21 : vector<16x32xf32>
    %c0_7 = arith.constant 0 : index
    %c0_8 = arith.constant 0 : index
    %23 = vector.load %arg3[%c0_7, %c0_8] : memref<1x32xf32, #tpu.memory_space<vmem>>, vector<1x32xf32>
    %24 = vector.broadcast %23 : vector<1x32xf32> to vector<16x32xf32>
    %25 = arith.addf %22, %24 : vector<16x32xf32>
    %26 = arith.truncf %25 : vector<16x32xf32> to vector<16x32xbf16>
    %c0_9 = arith.constant 0 : index
    %c0_10 = arith.constant 0 : index
    %27 = vector.load %arg4[%c0_9, %c0_10] : memref<16x32xbf16, #tpu.memory_space<vmem>>, vector<16x32xbf16>
    tpu.vector_store %arg4[%c0_9, %c0_10], %26 {strides = array<i32>} : memref<16x32xbf16, #tpu.memory_space<vmem>>, vector<16x32xbf16>,
    return
  }
  func.func @transform_0(%arg0: i32) -> (i32, i32) {
    %c0_i32 = arith.constant 0 : i32
    %c0_i32_0 = arith.constant 0 : i32
    return %arg0, %c0_i32 : i32, i32
  }
  func.func @transform_1(%arg0: i32) -> (i32, i32) {
    %c0_i32 = arith.constant 0 : i32
    %c0_i32_0 = arith.constant 0 : i32
    %c0_i32_1 = arith.constant 0 : i32
    return %c0_i32, %c0_i32_0 : i32, i32
  }
  func.func @transform_2(%arg0: i32) -> (i32, i32) {
    %c0_i32 = arith.constant 0 : i32
    %c0_i32_0 = arith.constant 0 : i32
    %c0_i32_1 = arith.constant 0 : i32
    return %c0_i32, %c0_i32_0 : i32, i32
  }
  func.func @transform_3(%arg0: i32) -> (i32, i32) {
    %c0_i32 = arith.constant 0 : i32
    %c0_i32_0 = arith.constant 0 : i32
    return %arg0, %c0_i32 : i32, i32
  }
}

</mosaic_0001>

<llo_original>
// kernel: tpu_custom_call.1
$region0: #{tpu_custom_call.1}
  #allocation0 [shape = 'u32[]', space=smem, size = 0x4, offset = 0x4, fixed_abs, tag = 'smem constant byte address 0x4 - core index']
  #allocation1 [shape = 'u32[144,128]{1,0:T(1,128)}', space=vmem, size = 0x12000, scoped, tag = 'internal scratch']
  %s0 = inlined_call_operand.hbm [shape: bf16[16,32], index: 0, kind: input, shape index: {}]
  %s1 = inlined_call_operand.vmem [shape: f32[1,32], index: 1, kind: input, shape index: {}]
  %s2 = inlined_call_operand.vmem [shape: f32[1,32], index: 2, kind: input, shape index: {}]
  %s3 = inlined_call_operand.hbm [shape: bf16[16,32], index: 3, kind: output, shape index: {}]
  %s4 = sld [smem:[#allocation0]]
  $region26: #{tpu_custom_call.1} parent=0
    _
  %s6 = ssub.s32 1, %s4
  %s7 = scalar_select 0, %s6, %s4
  $region1: #{tpu_custom_call.1} parent=0
    #allocation2 [shape = 'u8[4096]{0}', space=vmem, size = 0x1000, scoped, tag = 'input window, operand 0, single buffered']
    #allocation3 [shape = 's32[1]{0}', space=sflag, size = 0x4, scoped, tag = 'scoped memory for tpu_custom_call.1']
    #allocation4 [shape = 's32[1]{0}', space=sflag, size = 0x4, scoped, tag = 'scoped memory for tpu_custom_call.1']
    #allocation5 [shape = 'u8[4096]{0}', space=vmem, size = 0x1000, scoped, tag = 'output window, operand 0, single buffered']
    %8 = vsyncpa [#allocation3], 0
    %9 = vsyncpa [#allocation4], 0
    // Predicated region
    $region2: #{tpu_custom_call.1} parent=1 // pred_check
      _
    $region3: #{tpu_custom_call.1} parent=1 // pred_check_branch
      %11 = sbr.rel (0) target = $region5
    $region4: #{tpu_custom_call.1} parent=1 // pred_region
      %s13 = ssub.s32 128, 128
      %14 = vsyncadd [#allocation3], %s13
      %s15 = sshll.u32 [#allocation2], 4
      %s16 = int_to_ptr.vmem [resolvable:$true] %s15
      %21 = dma.hbm_to_vmem [thread:$0]  %s0, 128, %s16, [#allocation3], 64, 64, 4
    $region5: #{tpu_custom_call.1} parent=1 // pred_fallthru
      _
    // Predicated region
    $region6: #{tpu_custom_call.1} parent=1 // pred_check
      _
    $region7: #{tpu_custom_call.1} parent=1 // pred_check_branch
      %23 = sbr.rel (0) target = $region9
    $region8: #{tpu_custom_call.1} parent=1 // pred_region
      _
    $region9: #{tpu_custom_call.1} parent=1 // pred_fallthru
      _
    // Predicated region
    $region10: #{tpu_custom_call.1} parent=1 // pred_check
      _
    $region11: #{tpu_custom_call.1} parent=1 // pred_check_branch
      %25 = sbr.rel (0) target = $region13
    $region12: #{tpu_custom_call.1} parent=1 // pred_region
      _
    $region13: #{tpu_custom_call.1} parent=1 // pred_fallthru
      _
    // Predicated region
    $region14: #{tpu_custom_call.1} parent=1 // pred_check
      _
    $region15: #{tpu_custom_call.1} parent=1 // pred_check_branch
      %27 = sbr.rel (0) target = $region17
    $region16: #{tpu_custom_call.1} parent=1 // pred_region
      %28 = dma.done [#allocation3], 128
    $region17: #{tpu_custom_call.1} parent=1 // pred_fallthru
      _
    %v29 = vld [vmem:[#allocation2] sm:$0xf]
    %v30 = vld [vmem:[#allocation2 + $0x4] sm:$0xf]
    %v31 = vunpack.c.l.bf16 %v29
    %v32 = vunpack.c.l.bf16 %v30
    %vm33 = vcmask 261120
    %v34 = vsel %vm33, %v31, 0.0
    %35 = vadd.xlane.f32.xlu0 %v34
    %v36 = vpop.xlane.xlu0 %35
    %v37 = vsel %vm33, %v32, 0.0
    %38 = vadd.xlane.f32.xlu0 %v37
    %v39 = vpop.xlane.xlu0 %38
    %v40 = vrcp.pop 32.0
    %v41 = vmul.f32 %v36, %v40
    %v42 = vmul.f32 %v39, %v40
    %v43 = vsub.f32 %v31, %v41
    %v44 = vsub.f32 %v32, %v42
    %v45 = vmul.f32 %v43, %v43
    %v46 = vmul.f32 %v44, %v44
    %v47 = vsel %vm33, %v45, 0.0
    %48 = vadd.xlane.f32.xlu0 %v47
    %v49 = vpop.xlane.xlu0 %48
    %v50 = vsel %vm33, %v46, 0.0
    %51 = vadd.xlane.f32.xlu0 %v50
    %v52 = vpop.xlane.xlu0 %51
    %v53 = vmul.f32 %v49, %v40
    %v54 = vmul.f32 %v52, %v40
    %v55 = vadd.f32 %v53, 1e-12
    %v56 = vadd.f32 %v54, 1e-12
    %v57 = vrsqrt.pop %v55
    %v58 = vrsqrt.pop %v56
    %v59 = vmul.f32 %v43, %v57
    %v60 = vmul.f32 %v44, %v58
    %v61 = vld [vmem:[%s1] sm:$0x1]
    %v63 = vlaneseq
    %v64 = vshrl.u32 %v63, 7
    %v65 = vsub.s32 0, %v64
    %v66 = vrot.slane %v61, %v65
    %v68 = vmul.f32 %v59, %v66
    %v69 = vmul.f32 %v60, %v66
    %v70 = vld [vmem:[%s2] sm:$0x1]
    %v72 = vlaneseq
    %v73 = vshrl.u32 %v72, 7
    %v74 = vsub.s32 0, %v73
    %v75 = vrot.slane %v70, %v74
    %v77 = vadd.f32 %v68, %v75
    %v78 = vadd.f32 %v69, %v75
    %v79 = vpack.c.bf16 %v78, %v77
    %v81 = vunpack.c.l.b16 %v79
    %v82 = vunpack.c.h.b16 %v79
    %v83 = vpack.c.b16 %v81, %v81
    %v84 = vpack.c.b16 %v82, %v82
    %vm87 = vcmask 257024
    %88 = vst.msk [vmem:[#allocation5] sm:$0xf] %vm87, %v83
    %89 = vst.msk [vmem:[#allocation5 + $0x4] sm:$0xf] %vm87, %v84
    // Predicated region
    $region18: #{tpu_custom_call.1} parent=1 // pred_check
      _
    $region19: #{tpu_custom_call.1} parent=1 // pred_check_branch
      %91 = sbr.rel (0) target = $region21
    $region20: #{tpu_custom_call.1} parent=1 // pred_region
      %s93 = ssub.s32 128, 128
      %94 = vsyncadd [#allocation4], %s93
      %s95 = sshll.u32 [#allocation5], 4
      %s96 = int_to_ptr.vmem [resolvable:$true] %s95
      %101 = dma.vmem_to_hbm [thread:$0]  %s96, 128, %s3, [#allocation4], 64, 64, 4
    $region21: #{tpu_custom_call.1} parent=1 // pred_fallthru
      _
    // Predicated region
    $region22: #{tpu_custom_call.1} parent=1 // pred_check
      _
    $region23: #{tpu_custom_call.1} parent=1 // pred_check_branch
      %103 = sbr.rel (0) target = $region25
    $region24: #{tpu_custom_call.1} parent=1 // pred_region
      %104 = dma.done [#allocation4], 128
    $region25: #{tpu_custom_call.1} parent=1 // pred_fallthru
      _
    %105 = vsyncpa [#allocation3], 1
    %106 = vsyncpa [#allocation4], 1

</llo_original>
